<compile_context>
chip_gen: v7x
topology: tpu7x:2x2x1
jax: 0.10.0
libtpu: 0.0.40
codegen_flags: <defaults>
</compile_context>

<pallas_src>
import jax
import jax.numpy as jnp
from jax import lax
from jax.experimental import pallas as pl
from jax.experimental.pallas import tpu as pltpu

BN_EPS = 1e-5
SUB = 16          # channel (sublane) padding granule — bf16 native (16, 128) tile


def _round_up(v, m):
    return ((v + m - 1) // m) * m


def _pad2(a, rows, cols):
    r, c = a.shape
    return jnp.pad(a, ((0, rows - r), (0, cols - c)))


def _pad_vec(v, n):
    v = v.reshape(-1).astype(jnp.float32)
    return jnp.pad(v, (0, n - v.shape[0]))


# ---------------- pass 1: per-tile partial BN sums of yg = Wg@g, yx = Wx@x ----------------
def _stats_kernel(g_ref, x_ref, wg_ref, wx_ref, st_ref):
    # g_ref: (CG_S, tile_m) bf16, wg_ref: (CI_S, CG_S) bf16 -> yg: (CI_S, tile_m) f32 (MXU)
    yg = jnp.dot(wg_ref[...], g_ref[...], preferred_element_type=jnp.float32)
    yx = jnp.dot(wx_ref[...], x_ref[...], preferred_element_type=jnp.float32)
    # Padded M lanes are zero (and no bias is added), so they contribute 0 to every sum.
    st = jnp.stack(
        [jnp.sum(yg, axis=1, keepdims=True),
         jnp.sum(yg * yg, axis=1, keepdims=True),
         jnp.sum(yx, axis=1, keepdims=True),
         jnp.sum(yx * yx, axis=1, keepdims=True)], axis=0)       # (4, CI_S, 1)
    st_ref[...] = st[None]


# ---- pass 2: recompute yg/yx, folded BN + ReLU, psi 1x1 conv via VPU mul + sublane reduce ----
def _psi_kernel(g_ref, x_ref, wg_ref, wx_ref, coef_ref, p_ref):
    yg = jnp.dot(wg_ref[...], g_ref[...], preferred_element_type=jnp.float32)
    yx = jnp.dot(wx_ref[...], x_ref[...], preferred_element_type=jnp.float32)
    cs = coef_ref[...]                                           # (CI_S, 4) f32
    sc_g = cs[:, 0:1]
    sc_x = cs[:, 1:2]
    sh_gx = cs[:, 2:3]
    wp_c = cs[:, 3:4]
    a = jnp.maximum(yg * sc_g + yx * sc_x + sh_gx, 0.0)          # (CI_S, tile_m)
    # psi 1x1 conv (Ci -> 1): broadcast-multiply + sublane reduce, lane-dense (1, tile_m) out.
    p_ref[...] = jnp.sum(a * wp_c, axis=0, keepdims=True)


def attention_block(g_nchw, x_nchw, params, *, tile_m=8192):
    """Pallas TPU forward of Attention_block (training-mode BatchNorm, batch stats)."""
    wg, bg, gam_g, bet_g = params["W_g"]
    wx, bx, gam_x, bet_x = params["W_x"]
    wp, bp, gam_p, bet_p = params["psi"]
    del bg, bx, bp   # conv biases cancel exactly inside training-mode BatchNorm

    N, Cg, H, W = g_nchw.shape
    _, Cl, _, _ = x_nchw.shape
    Ci = wg.shape[0]                       # F_int
    M = N * H * W

    CG_S = _round_up(Cg, SUB)
    CL_S = _round_up(Cl, SUB)
    CI_S = _round_up(Ci, SUB)

    # Tile of the pixel (lane) axis: large to amortize the ~0.35 us per-grid-step overhead,
    # clamped to the problem size and to a conservative double-buffered VMEM budget
    # (safe on v7x's 64 MiB physical / 32 MiB scoped VMEM).
    tile_m = int(tile_m)
    while tile_m > 512 and (CG_S + CL_S) * tile_m * 2 * 2 > 8 * 1024 * 1024:
        tile_m //= 2
    tile_m = max(128, min(tile_m, _round_up(M, 128)))
    n_tiles = pl.cdiv(M, tile_m)
    M_pad = n_tiles * tile_m

    # ---- glue: NCHW -> (C_pad, M_pad) channels-on-sublane layout, single bf16 copy ----
    g_cm = _pad2(jnp.transpose(g_nchw, (1, 0, 2, 3)).reshape(Cg, M),
                 CG_S, M_pad).astype(jnp.bfloat16)
    x_cm = _pad2(jnp.transpose(x_nchw, (1, 0, 2, 3)).reshape(Cl, M),
                 CL_S, M_pad).astype(jnp.bfloat16)

    # 1x1 conv weights (Cout, Cin, 1, 1) -> (CI_S, Cin_S), zero-padded, bf16
    wg2 = _pad2(wg.reshape(Ci, Cg), CI_S, CG_S).astype(jnp.bfloat16)
    wx2 = _pad2(wx.reshape(Ci, Cl), CI_S, CL_S).astype(jnp.bfloat16)

    cparams = pltpu.CompilerParams(
        dimension_semantics=("parallel",),       # M tiles shard across v7x's 2 TensorCores
        vmem_limit_bytes=32 * 1024 * 1024,
    )

    g_spec = pl.BlockSpec((CG_S, tile_m), lambda i: (0, i))
    x_spec = pl.BlockSpec((CL_S, tile_m), lambda i: (0, i))
    wg_spec = pl.BlockSpec((CI_S, CG_S), lambda i: (0, 0))
    wx_spec = pl.BlockSpec((CI_S, CL_S), lambda i: (0, 0))

    # ---- pass 1: partial sums for the W_g / W_x BatchNorm (no yg/yx materialization) ----
    st_parts = pl.pallas_call(
        _stats_kernel,
        out_shape=jax.ShapeDtypeStruct((n_tiles, 4, CI_S, 1), jnp.float32),
        grid=(n_tiles,),
        in_specs=[g_spec, x_spec, wg_spec, wx_spec],
        out_specs=pl.BlockSpec((1, 4, CI_S, 1), lambda i: (i, 0, 0, 0)),
        compiler_params=cparams,
    )(g_cm, x_cm, wg2, wx2)

    # ---- glue (O(channels)): fold global training-mode BN stats into scale/shift ----
    st = jnp.sum(st_parts, axis=0)[:, :, 0]      # (4, CI_S)
    inv_m = 1.0 / M
    mean_g = st[0] * inv_m
    var_g = jnp.maximum(st[1] * inv_m - mean_g * mean_g, 0.0)    # biased var (PyTorch train)
    mean_x = st[2] * inv_m
    var_x = jnp.maximum(st[3] * inv_m - mean_x * mean_x, 0.0)
    sc_g = _pad_vec(gam_g, CI_S) * lax.rsqrt(var_g + BN_EPS)
    sh_g = _pad_vec(bet_g, CI_S) - mean_g * sc_g
    sc_x = _pad_vec(gam_x, CI_S) * lax.rsqrt(var_x + BN_EPS)
    sh_x = _pad_vec(bet_x, CI_S) - mean_x * sc_x
    wp_v = _pad_vec(wp.reshape(Ci), CI_S)
    coef = jnp.stack([sc_g, sc_x, sh_g + sh_x, wp_v], axis=1)    # (CI_S, 4) f32

    # ---- pass 2: psi pre-activation p, one f32 per pixel, lane-dense (1, M_pad) ----
    p_pad = pl.pallas_call(
        _psi_kernel,
        out_shape=jax.ShapeDtypeStruct((1, M_pad), jnp.float32),
        grid=(n_tiles,),
        in_specs=[g_spec, x_spec, wg_spec, wx_spec,
                  pl.BlockSpec((CI_S, 4), lambda i: (0, 0))],
        out_specs=pl.BlockSpec((1, tile_m), lambda i: (0, i)),
        compiler_params=cparams,
    )(g_cm, x_cm, wg2, wx2, coef)

    # ---- plain-JAX epilogue on tiny / unavoidable traffic: psi BN + sigmoid + NCHW gate ----
    p = p_pad[0, :M]                             # (M,) in (n, h, w) order
    mean_p = jnp.mean(p)
    var_p = jnp.mean(jnp.square(p - mean_p))     # exact two-pass stats
    psi = jax.nn.sigmoid((p - mean_p) * lax.rsqrt(var_p + BN_EPS)
                         * gam_p.reshape(()) + bet_p.reshape(()))
    return x_nchw * psi.reshape(N, 1, H, W)


# ---------------------------- plain-JAX reference (f32) ----------------------------
def _bn_train(y, gamma, beta):
    mean = jnp.mean(y, axis=0, keepdims=True)
    var = jnp.mean((y - mean) ** 2, axis=0, keepdims=True)
    return (y - mean) * lax.rsqrt(var + BN_EPS) * gamma + beta


def ref_attention_block(g, x, params):
    wg, bg, gam_g, bet_g = params["W_g"]
    wx, bx, gam_x, bet_x = params["W_x"]
    wp, bp, gam_p, bet_p = params["psi"]
    N, Cg, H, W = g.shape
    _, Cl, _, _ = x.shape
    Ci = wg.shape[0]
    M = N * H * W
    g2 = jnp.transpose(g, (0, 2, 3, 1)).reshape(M, Cg)
    x2 = jnp.transpose(x, (0, 2, 3, 1)).reshape(M, Cl)
    y_g = g2 @ wg.reshape(Ci, Cg).T + bg
    y_x = x2 @ wx.reshape(Ci, Cl).T + bx
    a = jnp.maximum(_bn_train(y_g, gam_g, bet_g) + _bn_train(y_x, gam_x, bet_x), 0.0)
    p = a @ wp.reshape(1, Ci).T + bp
    psi = jax.nn.sigmoid(_bn_train(p, gam_p, bet_p))
    out = (x2 * psi).reshape(N, H, W, Cl)
    return jnp.transpose(out, (0, 3, 1, 2))


if __name__ == "__main__":
    key = jax.random.PRNGKey(0)
    keys = jax.random.split(key, 5)

    # Attention_block(F_g=4, F_l=4, F_int=8) on (N=2, H=W=16)
    N, F_g, F_l, F_int, H, W = 2, 4, 4, 8, 16, 16

    g = jax.random.normal(keys[0], (N, F_g, H, W), jnp.float32)
    x = jax.random.normal(keys[1], (N, F_l, H, W), jnp.float32)

    def conv1x1_init(k, cout, cin):
        # Conv2d default init: U(-1/sqrt(fan_in), 1/sqrt(fan_in)) for weight and bias
        bound = 1.0 / (cin ** 0.5)
        kw_, kb_ = jax.random.split(k)
        w = jax.random.uniform(kw_, (cout, cin, 1, 1), jnp.float32, -bound, bound)
        b = jax.random.uniform(kb_, (cout,), jnp.float32, -bound, bound)
        return w, b

    wg, bg = conv1x1_init(keys[2], F_int, F_g)
    wx, bx = conv1x1_init(keys[3], F_int, F_l)
    wp, bp = conv1x1_init(keys[4], 1, F_int)

    params = {
        "W_g": (wg, bg, jnp.ones((F_int,), jnp.float32), jnp.zeros((F_int,), jnp.float32)),
        "W_x": (wx, bx, jnp.ones((F_int,), jnp.float32), jnp.zeros((F_int,), jnp.float32)),
        "psi": (wp, bp, jnp.ones((1,), jnp.float32), jnp.zeros((1,), jnp.float32)),
    }

    y = attention_block(g, x, params)
    jax.block_until_ready(y)
    assert y.shape == (N, F_l, H, W)

    y_ref = ref_attention_block(g, x, params)
    max_err = float(jnp.max(jnp.abs(y - y_ref)))
    assert max_err < 0.1, f"mismatch vs reference: max abs err {max_err}"

    print("KERNEL_OK")
</pallas_src>

<mosaic_0001>
module attributes {stable_mosaic.version = 11 : i64} {
  func.func @_stats_kernel(%arg0: i32, %arg1: memref<16x512xbf16, #tpu.memory_space<vmem>>, %arg2: memref<16x512xbf16, #tpu.memory_space<vmem>>, %arg3: memref<16x16xbf16, #tpu.memory_space<vmem>>, %arg4: memref<16x16xbf16, #tpu.memory_space<vmem>>, %arg5: memref<1x4x16x1xf32, #tpu.memory_space<vmem>>) attributes {dimension_semantics = [#tpu.dimension_semantics<parallel>], iteration_bounds = array<i64: 1>, scalar_prefetch = 0 : i64, scratch_operands = 0 : i64, tpu.core_type = #tpu.core_type<tc>, window_params = [{transform_indices = @transform_0, window_bounds = array<i64: 16, 512>}, {transform_indices = @transform_1, window_bounds = array<i64: 16, 512>}, {pipeline_mode = #tpu.pipeline_mode<synchronous>, transform_indices = @transform_2, window_bounds = array<i64: 16, 16>}, {pipeline_mode = #tpu.pipeline_mode<synchronous>, transform_indices = @transform_3, window_bounds = array<i64: 16, 16>}, {transform_indices = @transform_4, window_bounds = array<i64: 1, 4, 16, 1>}]} {
    %c0 = arith.constant 0 : index
    %c0_0 = arith.constant 0 : index
    %0 = vector.load %arg3[%c0, %c0_0] : memref<16x16xbf16, #tpu.memory_space<vmem>>, vector<16x16xbf16>
    %c0_1 = arith.constant 0 : index
    %c0_2 = arith.constant 0 : index
    %1 = vector.load %arg1[%c0_1, %c0_2] : memref<16x512xbf16, #tpu.memory_space<vmem>>, vector<16x512xbf16>
    %cst = arith.constant dense<0.000000e+00> : vector<16x512xf32>
    %2 = tpu.matmul %0, %1, %cst {dimension_numbers = #tpu.dot_dimension_numbers<[1], [0], [0], [1], [0, 0, 1, 1], [], []>} : vector<16x16xbf16>, vector<16x512xbf16>, vector<16x512xf32> -> vector<16x512xf32>
    %c0_3 = arith.constant 0 : index
    %c0_4 = arith.constant 0 : index
    %3 = vector.load %arg4[%c0_3, %c0_4] : memref<16x16xbf16, #tpu.memory_space<vmem>>, vector<16x16xbf16>
    %c0_5 = arith.constant 0 : index
    %c0_6 = arith.constant 0 : index
    %4 = vector.load %arg2[%c0_5, %c0_6] : memref<16x512xbf16, #tpu.memory_space<vmem>>, vector<16x512xbf16>
    %cst_7 = arith.constant dense<0.000000e+00> : vector<16x512xf32>
    %5 = tpu.matmul %3, %4, %cst_7 {dimension_numbers = #tpu.dot_dimension_numbers<[1], [0], [0], [1], [0, 0, 1, 1], [], []>} : vector<16x16xbf16>, vector<16x512xbf16>, vector<16x512xf32> -> vector<16x512xf32>
    %cst_8 = arith.constant dense<0.000000e+00> : vector<16xf32>
    %6 = vector.multi_reduction <add>, %2, %cst_8 [1] : vector<16x512xf32> to vector<16xf32>
    %7 = vector.shape_cast %6 : vector<16xf32> to vector<16x1xf32>
    %8 = arith.mulf %2, %2 : vector<16x512xf32>
    %cst_9 = arith.constant dense<0.000000e+00> : vector<16xf32>
    %9 = vector.multi_reduction <add>, %8, %cst_9 [1] : vector<16x512xf32> to vector<16xf32>
    %10 = vector.shape_cast %9 : vector<16xf32> to vector<16x1xf32>
    %cst_10 = arith.constant dense<0.000000e+00> : vector<16xf32>
    %11 = vector.multi_reduction <add>, %5, %cst_10 [1] : vector<16x512xf32> to vector<16xf32>
    %12 = vector.shape_cast %11 : vector<16xf32> to vector<16x1xf32>
    %13 = arith.mulf %5, %5 : vector<16x512xf32>
    %cst_11 = arith.constant dense<0.000000e+00> : vector<16xf32>
    %14 = vector.multi_reduction <add>, %13, %cst_11 [1] : vector<16x512xf32> to vector<16xf32>
    %15 = vector.shape_cast %14 : vector<16xf32> to vector<16x1xf32>
    %16 = vector.shape_cast %7 : vector<16x1xf32> to vector<1x16x1xf32>
    %17 = vector.shape_cast %10 : vector<16x1xf32> to vector<1x16x1xf32>
    %18 = vector.shape_cast %12 : vector<16x1xf32> to vector<1x16x1xf32>
    %19 = vector.shape_cast %15 : vector<16x1xf32> to vector<1x16x1xf32>
    %20 = tpu.concatenate %16, %17, %18, %19 in 0 : vector<1x16x1xf32>, vector<1x16x1xf32>, vector<1x16x1xf32>, vector<1x16x1xf32> -> vector<4x16x1xf32>
    %21 = vector.shape_cast %20 : vector<4x16x1xf32> to vector<1x4x16x1xf32>
    %c0_12 = arith.constant 0 : index
    %c0_13 = arith.constant 0 : index
    %c0_14 = arith.constant 0 : index
    %c0_15 = arith.constant 0 : index
    %22 = vector.load %arg5[%c0_12, %c0_13, %c0_14, %c0_15] : memref<1x4x16x1xf32, #tpu.memory_space<vmem>>, vector<1x4x16x1xf32>
    tpu.vector_store %arg5[%c0_12, %c0_13, %c0_14, %c0_15], %21 {strides = array<i32>} : memref<1x4x16x1xf32, #tpu.memory_space<vmem>>, vector<1x4x16x1xf32>,
    return
  }
  func.func @transform_0(%arg0: i32) -> (i32, i32) {
    %c0_i32 = arith.constant 0 : i32
    %c0_i32_0 = arith.constant 0 : i32
    return %c0_i32, %arg0 : i32, i32
  }
  func.func @transform_1(%arg0: i32) -> (i32, i32) {
    %c0_i32 = arith.constant 0 : i32
    %c0_i32_0 = arith.constant 0 : i32
    return %c0_i32, %arg0 : i32, i32
  }
  func.func @transform_2(%arg0: i32) -> (i32, i32) {
    %c0_i32 = arith.constant 0 : i32
    %c0_i32_0 = arith.constant 0 : i32
    %c0_i32_1 = arith.constant 0 : i32
    return %c0_i32, %c0_i32_0 : i32, i32
  }
  func.func @transform_3(%arg0: i32) -> (i32, i32) {
    %c0_i32 = arith.constant 0 : i32
    %c0_i32_0 = arith.constant 0 : i32
    %c0_i32_1 = arith.constant 0 : i32
    return %c0_i32, %c0_i32_0 : i32, i32
  }
  func.func @transform_4(%arg0: i32) -> (i32, i32, i32, i32) {
    %c0_i32 = arith.constant 0 : i32
    %c0_i32_0 = arith.constant 0 : i32
    %c0_i32_1 = arith.constant 0 : i32
    %c0_i32_2 = arith.constant 0 : i32
    return %arg0, %c0_i32, %c0_i32_0, %c0_i32_1 : i32, i32, i32, i32
  }
}

</mosaic_0001>

<llo_original>
// kernel: tpu_custom_call.1
$region0: #{tpu_custom_call.1}
  #allocation0 [shape = 'u32[]', space=smem, size = 0x4, offset = 0x4, fixed_abs, tag = 'smem constant byte address 0x4 - core index']
  #allocation1 [shape = 'u32[144,128]{1,0:T(1,128)}', space=vmem, size = 0x12000, scoped, tag = 'internal scratch']
  %s0 = inlined_call_operand.hbm [shape: bf16[16,512], index: 0, kind: input, shape index: {}]
  %s1 = inlined_call_operand.hbm [shape: bf16[16,512], index: 1, kind: input, shape index: {}]
  %s2 = inlined_call_operand.hbm [shape: bf16[16,16], index: 2, kind: input, shape index: {}]
  %s3 = inlined_call_operand.vmem [shape: bf16[16,16], index: 3, kind: input, shape index: {}]
  %s4 = inlined_call_operand.vmem [shape: f32[1,4,16,1], index: 4, kind: output, shape index: {}]
  %s5 = sld [smem:[#allocation0]]
  $region38: #{tpu_custom_call.1} parent=0
    _
  %s7 = ssub.s32 1, %s5
  %s8 = scalar_select 0, %s7, %s5
  $region1: #{tpu_custom_call.1} parent=0
    #allocation2 [shape = 'u8[16384]{0}', space=vmem, size = 0x4000, scoped, tag = 'input window, operand 0, single buffered']
    #allocation3 [shape = 's32[1]{0}', space=sflag, size = 0x4, scoped, tag = 'scoped memory for tpu_custom_call.1']
    #allocation4 [shape = 'u8[16384]{0}', space=vmem, size = 0x4000, scoped, tag = 'input window, operand 1, single buffered']
    #allocation5 [shape = 's32[1]{0}', space=sflag, size = 0x4, scoped, tag = 'scoped memory for tpu_custom_call.1']
    #allocation6 [shape = 'u8[4096]{0}', space=vmem, size = 0x1000, scoped, tag = 'input window, operand 2, single buffered']
    %9 = vsyncpa [#allocation3], 0
    %10 = vsyncpa [#allocation5], 0
    // Predicated region
    $region2: #{tpu_custom_call.1} parent=1 // pred_check
      _
    $region3: #{tpu_custom_call.1} parent=1 // pred_check_branch
      %12 = sbr.rel (0) target = $region5
    $region4: #{tpu_custom_call.1} parent=1 // pred_region
      %s14 = ssub.s32 512, 512
      %15 = vsyncadd [#allocation3], %s14
      %s16 = sshll.u32 [#allocation2], 4
      %s17 = int_to_ptr.vmem [resolvable:$true] %s16
      %22 = dma.hbm_to_vmem [thread:$0]  %s0, 512, %s17, [#allocation3], 256, 256, 16
    $region5: #{tpu_custom_call.1} parent=1 // pred_fallthru
      _
    // Predicated region
    $region6: #{tpu_custom_call.1} parent=1 // pred_check
      _
    $region7: #{tpu_custom_call.1} parent=1 // pred_check_branch
      %24 = sbr.rel (0) target = $region9
    $region8: #{tpu_custom_call.1} parent=1 // pred_region
      %s26 = ssub.s32 512, 512
      %27 = vsyncadd [#allocation5], %s26
      %s28 = sshll.u32 [#allocation4], 4
      %s29 = int_to_ptr.vmem [resolvable:$true] %s28
      %34 = dma.hbm_to_vmem [thread:$0]  %s1, 512, %s29, [#allocation5], 256, 256, 16
    $region9: #{tpu_custom_call.1} parent=1 // pred_fallthru
      _
    // Predicated region
    $region10: #{tpu_custom_call.1} parent=1 // pred_check
      _
    $region11: #{tpu_custom_call.1} parent=1 // pred_check_branch
      %36 = sbr.rel (0) target = $region13
    $region12: #{tpu_custom_call.1} parent=1 // pred_region
      %s38 = ssub.s32 128, 128
      %39 = vsyncadd [#allocation5], %s38
      %s40 = sshll.u32 [#allocation6], 4
      %s41 = int_to_ptr.vmem [resolvable:$true] %s40
      %46 = dma.hbm_to_vmem [thread:$0]  %s2, 128, %s41, [#allocation5], 64, 64, 4
    $region13: #{tpu_custom_call.1} parent=1 // pred_fallthru
      _
    // Predicated region
    $region14: #{tpu_custom_call.1} parent=1 // pred_check
      _
    $region15: #{tpu_custom_call.1} parent=1 // pred_check_branch
      %48 = sbr.rel (0) target = $region17
    $region16: #{tpu_custom_call.1} parent=1 // pred_region
      _
    $region17: #{tpu_custom_call.1} parent=1 // pred_fallthru
      _
    // Predicated region
    $region18: #{tpu_custom_call.1} parent=1 // pred_check
      _
    $region19: #{tpu_custom_call.1} parent=1 // pred_check_branch
      %50 = sbr.rel (0) target = $region21
    $region20: #{tpu_custom_call.1} parent=1 // pred_region
      %51 = dma.done [#allocation3], 512
    $region21: #{tpu_custom_call.1} parent=1 // pred_fallthru
      _
    // Predicated region
    $region22: #{tpu_custom_call.1} parent=1 // pred_check
      _
    $region23: #{tpu_custom_call.1} parent=1 // pred_check_branch
      %53 = sbr.rel (0) target = $region25
    $region24: #{tpu_custom_call.1} parent=1 // pred_region
      %54 = dma.done [#allocation5], 512
    $region25: #{tpu_custom_call.1} parent=1 // pred_fallthru
      _
    // Predicated region
    $region26: #{tpu_custom_call.1} parent=1 // pred_check
      _
    $region27: #{tpu_custom_call.1} parent=1 // pred_check_branch
      %56 = sbr.rel (0) target = $region29
    $region28: #{tpu_custom_call.1} parent=1 // pred_region
      %57 = dma.done [#allocation5], 128
    $region29: #{tpu_custom_call.1} parent=1 // pred_fallthru
      _
    %v59 = vld [vmem:[#allocation6] sm:$0xf]
    %v60 = vld [vmem:[#allocation6 + $0x4] sm:$0xf]
    %v61 = vld [vmem:[#allocation2] sm:$0xff]
    %v62 = vld [vmem:[#allocation2 + $0x8] sm:$0xff]
    %v63 = vld [vmem:[#allocation2 + $0x10] sm:$0xff]
    %v64 = vld [vmem:[#allocation2 + $0x18] sm:$0xff]
    %v67 = vunpack.c.l.b16 %v59
    %v68 = vunpack.c.l.b16 %v60
    %v69 = vpack.c.b16 %v68, %v67
    %v74 = vunpack.c.l.b16 %v61
    %v75 = vunpack.c.h.b16 %v61
    %v76 = vunpack.c.l.b16 %v62
    %v77 = vunpack.c.h.b16 %v62
    %v78 = vunpack.c.l.b16 %v63
    %v79 = vunpack.c.h.b16 %v63
    %v80 = vunpack.c.l.b16 %v64
    %v81 = vunpack.c.h.b16 %v64
    %v82 = vpack.c.b16 %v78, %v74
    %v83 = vpack.c.b16 %v79, %v75
    %v84 = vpack.c.b16 %v80, %v76
    %v85 = vpack.c.b16 %v81, %v77
    %vm90 = vcmask 130048
    %v92 = vsel %vm90, %v69, 0
    %94 = vmatprep.subr.bf16.mxu0 %v83
    %95 = vmatpush1.bf16.msra.mxu0 %v82
    %96 = vmatprep.subr.bf16.mxu0 0
    %97 = vmatpush1.bf16.msra.mxu0 0
    %98 = vmatprep.subr.bf16.mxu0 0
    %99 = vmatpush1.bf16.msra.mxu0 0
    %100 = vmatprep.subr.bf16.mxu0 0
    %101 = vmatpush1.bf16.msra.mxu0 0
    %102 = vmatprep.subr.bf16.mxu0 0
    %103 = vmatpush1.bf16.msra.mxu0 0
    %104 = vmatprep.subr.bf16.mxu0 0
    %105 = vmatpush1.bf16.msra.mxu0 0
    %106 = vmatprep.subr.bf16.mxu0 0
    %107 = vmatpush1.bf16.msra.mxu0 0
    %108 = vmatprep.subr.bf16.mxu0 0
    %109 = vmatpush1.bf16.msra.mxu0 0
    %110 = vmatprep.subr.bf16.mxu0 0
    %111 = vmatpush1.bf16.msra.mxu0 0
    %112 = vmatprep.subr.bf16.mxu0 0
    %113 = vmatpush1.bf16.msra.mxu0 0
    %114 = vmatprep.subr.bf16.mxu0 0
    %115 = vmatpush1.bf16.msra.mxu0 0
    %116 = vmatprep.subr.bf16.mxu0 0
    %117 = vmatpush1.bf16.msra.mxu0 0
    %118 = vmatprep.subr.bf16.mxu0 0
    %119 = vmatpush1.bf16.msra.mxu0 0
    %120 = vmatprep.subr.bf16.mxu0 0
    %121 = vmatpush1.bf16.msra.mxu0 0
    %122 = vmatprep.subr.bf16.mxu0 0
    %123 = vmatpush1.bf16.msra.mxu0 0
    %124 = vmatprep.subr.bf16.mxu0 0
    %125 = vmatpush1.bf16.msra.mxu0 0
    %126 = vmatprep.mubr.bf16.mxu0 0
    %127 = vmatmul.mubr.bf16.gmra.mrb[0].mxu0 %v92
    %v128 = vpop.f32.mrb[0].mxu0
    %v129 = vadd.f32 0.0, %v128
    %v130 = vpop.f32.mrb[0].mxu0
    %v131 = vadd.f32 0.0, %v130
    %v132 = vpop.f32.mrb[0].mxu0
    %v133 = vadd.f32 0.0, %v132
    %v134 = vpop.f32.mrb[0].mxu0
    %v135 = vadd.f32 0.0, %v134
    %136 = vdwg.mxu0
    %137 = vmatprep.subr.bf16.mxu0 %v85
    %138 = vmatpush1.bf16.msra.mxu0 %v84
    %139 = vmatprep.subr.bf16.mxu0 0
    %140 = vmatpush1.bf16.msra.mxu0 0
    %141 = vmatprep.subr.bf16.mxu0 0
    %142 = vmatpush1.bf16.msra.mxu0 0
    %143 = vmatprep.subr.bf16.mxu0 0
    %144 = vmatpush1.bf16.msra.mxu0 0
    %145 = vmatprep.subr.bf16.mxu0 0
    %146 = vmatpush1.bf16.msra.mxu0 0
    %147 = vmatprep.subr.bf16.mxu0 0
    %148 = vmatpush1.bf16.msra.mxu0 0
    %149 = vmatprep.subr.bf16.mxu0 0
    %150 = vmatpush1.bf16.msra.mxu0 0
    %151 = vmatprep.subr.bf16.mxu0 0
    %152 = vmatpush1.bf16.msra.mxu0 0
    %153 = vmatprep.subr.bf16.mxu0 0
    %154 = vmatpush1.bf16.msra.mxu0 0
    %155 = vmatprep.subr.bf16.mxu0 0
    %156 = vmatpush1.bf16.msra.mxu0 0
    %157 = vmatprep.subr.bf16.mxu0 0
    %158 = vmatpush1.bf16.msra.mxu0 0
    %159 = vmatprep.subr.bf16.mxu0 0
    %160 = vmatpush1.bf16.msra.mxu0 0
    %161 = vmatprep.subr.bf16.mxu0 0
    %162 = vmatpush1.bf16.msra.mxu0 0
    %163 = vmatprep.subr.bf16.mxu0 0
    %164 = vmatpush1.bf16.msra.mxu0 0
    %165 = vmatprep.subr.bf16.mxu0 0
    %166 = vmatpush1.bf16.msra.mxu0 0
    %167 = vmatprep.subr.bf16.mxu0 0
    %168 = vmatpush1.bf16.msra.mxu0 0
    %169 = vmatprep.mubr.bf16.mxu0 0
    %170 = vmatmul.mubr.bf16.gmra.mrb[0].mxu0 %v92
    %v171 = vpop.f32.mrb[0].mxu0
    %v172 = vadd.f32 0.0, %v171
    %v173 = vpop.f32.mrb[0].mxu0
    %v174 = vadd.f32 0.0, %v173
    %v175 = vpop.f32.mrb[0].mxu0
    %v176 = vadd.f32 0.0, %v175
    %v177 = vpop.f32.mrb[0].mxu0
    %v178 = vadd.f32 0.0, %v177
    %179 = vdwg.mxu0
    %v180 = vld [vmem:[%s3] sm:$0xf]
    %v181 = vld [vmem:[%s3 + $0x4] sm:$0xf]
    %v182 = vld [vmem:[#allocation4] sm:$0xff]
    %v183 = vld [vmem:[#allocation4 + $0x8] sm:$0xff]
    %v184 = vld [vmem:[#allocation4 + $0x10] sm:$0xff]
    %v185 = vld [vmem:[#allocation4 + $0x18] sm:$0xff]
    %v188 = vunpack.c.l.b16 %v180
    %v189 = vunpack.c.l.b16 %v181
    %v190 = vpack.c.b16 %v189, %v188
    %v195 = vunpack.c.l.b16 %v182
    %v196 = vunpack.c.h.b16 %v182
    %v197 = vunpack.c.l.b16 %v183
    %v198 = vunpack.c.h.b16 %v183
    %v199 = vunpack.c.l.b16 %v184
    %v200 = vunpack.c.h.b16 %v184
    %v201 = vunpack.c.l.b16 %v185
    %v202 = vunpack.c.h.b16 %v185
    %v203 = vpack.c.b16 %v199, %v195
    %v204 = vpack.c.b16 %v200, %v196
    %v205 = vpack.c.b16 %v201, %v197
    %v206 = vpack.c.b16 %v202, %v198
    %v212 = vsel %vm90, %v190, 0
    %214 = vmatprep.subr.bf16.mxu0 %v204
    %215 = vmatpush1.bf16.msra.mxu0 %v203
    %216 = vmatprep.subr.bf16.mxu0 0
    %217 = vmatpush1.bf16.msra.mxu0 0
    %218 = vmatprep.subr.bf16.mxu0 0
    %219 = vmatpush1.bf16.msra.mxu0 0
    %220 = vmatprep.subr.bf16.mxu0 0
    %221 = vmatpush1.bf16.msra.mxu0 0
    %222 = vmatprep.subr.bf16.mxu0 0
    %223 = vmatpush1.bf16.msra.mxu0 0
    %224 = vmatprep.subr.bf16.mxu0 0
    %225 = vmatpush1.bf16.msra.mxu0 0
    %226 = vmatprep.subr.bf16.mxu0 0
    %227 = vmatpush1.bf16.msra.mxu0 0
    %228 = vmatprep.subr.bf16.mxu0 0
    %229 = vmatpush1.bf16.msra.mxu0 0
    %230 = vmatprep.subr.bf16.mxu0 0
    %231 = vmatpush1.bf16.msra.mxu0 0
    %232 = vmatprep.subr.bf16.mxu0 0
    %233 = vmatpush1.bf16.msra.mxu0 0
    %234 = vmatprep.subr.bf16.mxu0 0
    %235 = vmatpush1.bf16.msra.mxu0 0
    %236 = vmatprep.subr.bf16.mxu0 0
    %237 = vmatpush1.bf16.msra.mxu0 0
    %238 = vmatprep.subr.bf16.mxu0 0
    %239 = vmatpush1.bf16.msra.mxu0 0
    %240 = vmatprep.subr.bf16.mxu0 0
    %241 = vmatpush1.bf16.msra.mxu0 0
    %242 = vmatprep.subr.bf16.mxu0 0
    %243 = vmatpush1.bf16.msra.mxu0 0
    %244 = vmatprep.subr.bf16.mxu0 0
    %245 = vmatpush1.bf16.msra.mxu0 0
    %246 = vmatprep.mubr.bf16.mxu0 0
    %247 = vmatmul.mubr.bf16.gmra.mrb[0].mxu0 %v212
    %v248 = vpop.f32.mrb[0].mxu0
    %v249 = vadd.f32 0.0, %v248
    %v250 = vpop.f32.mrb[0].mxu0
    %v251 = vadd.f32 0.0, %v250
    %v252 = vpop.f32.mrb[0].mxu0
    %v253 = vadd.f32 0.0, %v252
    %v254 = vpop.f32.mrb[0].mxu0
    %v255 = vadd.f32 0.0, %v254
    %256 = vdwg.mxu0
    %257 = vmatprep.subr.bf16.mxu0 %v206
    %258 = vmatpush1.bf16.msra.mxu0 %v205
    %259 = vmatprep.subr.bf16.mxu0 0
    %260 = vmatpush1.bf16.msra.mxu0 0
    %261 = vmatprep.subr.bf16.mxu0 0
    %262 = vmatpush1.bf16.msra.mxu0 0
    %263 = vmatprep.subr.bf16.mxu0 0
    %264 = vmatpush1.bf16.msra.mxu0 0
    %265 = vmatprep.subr.bf16.mxu0 0
    %266 = vmatpush1.bf16.msra.mxu0 0
    %267 = vmatprep.subr.bf16.mxu0 0
    %268 = vmatpush1.bf16.msra.mxu0 0
    %269 = vmatprep.subr.bf16.mxu0 0
    %270 = vmatpush1.bf16.msra.mxu0 0
    %271 = vmatprep.subr.bf16.mxu0 0
    %272 = vmatpush1.bf16.msra.mxu0 0
    %273 = vmatprep.subr.bf16.mxu0 0
    %274 = vmatpush1.bf16.msra.mxu0 0
    %275 = vmatprep.subr.bf16.mxu0 0
    %276 = vmatpush1.bf16.msra.mxu0 0
    %277 = vmatprep.subr.bf16.mxu0 0
    %278 = vmatpush1.bf16.msra.mxu0 0
    %279 = vmatprep.subr.bf16.mxu0 0
    %280 = vmatpush1.bf16.msra.mxu0 0
    %281 = vmatprep.subr.bf16.mxu0 0
    %282 = vmatpush1.bf16.msra.mxu0 0
    %283 = vmatprep.subr.bf16.mxu0 0
    %284 = vmatpush1.bf16.msra.mxu0 0
    %285 = vmatprep.subr.bf16.mxu0 0
    %286 = vmatpush1.bf16.msra.mxu0 0
    %287 = vmatprep.subr.bf16.mxu0 0
    %288 = vmatpush1.bf16.msra.mxu0 0
    %289 = vmatprep.mubr.bf16.mxu0 0
    %290 = vmatmul.mubr.bf16.gmra.mrb[0].mxu0 %v212
    %v291 = vpop.f32.mrb[0].mxu0
    %v292 = vadd.f32 0.0, %v291
    %v293 = vpop.f32.mrb[0].mxu0
    %v294 = vadd.f32 0.0, %v293
    %v295 = vpop.f32.mrb[0].mxu0
    %v296 = vadd.f32 0.0, %v295
    %v297 = vpop.f32.mrb[0].mxu0
    %v298 = vadd.f32 0.0, %v297
    %299 = vdwg.mxu0
    %v300 = vadd.f32 %v129, %v131
    %v301 = vadd.f32 %v300, %v172
    %v302 = vadd.f32 %v301, %v174
    %303 = vadd.xlane.f32.xlu0 %v302
    %v304 = vpop.xlane.xlu0 %303
    %v305 = vadd.f32 %v133, %v135
    %v306 = vadd.f32 %v305, %v176
    %v307 = vadd.f32 %v306, %v178
    %308 = vadd.xlane.f32.xlu0 %v307
    %v309 = vpop.xlane.xlu0 %308
    %v310 = vmul.f32 %v129, %v129
    %v311 = vmul.f32 %v131, %v131
    %v312 = vmul.f32 %v172, %v172
    %v313 = vmul.f32 %v174, %v174
    %v314 = vmul.f32 %v133, %v133
    %v315 = vmul.f32 %v135, %v135
    %v316 = vmul.f32 %v176, %v176
    %v317 = vmul.f32 %v178, %v178
    %v318 = vadd.f32 %v310, %v311
    %v319 = vadd.f32 %v318, %v312
    %v320 = vadd.f32 %v319, %v313
    %321 = vadd.xlane.f32.xlu0 %v320
    %v322 = vpop.xlane.xlu0 %321
    %v323 = vadd.f32 %v314, %v315
    %v324 = vadd.f32 %v323, %v316
    %v325 = vadd.f32 %v324, %v317
    %326 = vadd.xlane.f32.xlu0 %v325
    %v327 = vpop.xlane.xlu0 %326
    %v328 = vadd.f32 %v249, %v251
    %v329 = vadd.f32 %v328, %v292
    %v330 = vadd.f32 %v329, %v294
    %331 = vadd.xlane.f32.xlu0 %v330
    %v332 = vpop.xlane.xlu0 %331
    %v333 = vadd.f32 %v253, %v255
    %v334 = vadd.f32 %v333, %v296
    %v335 = vadd.f32 %v334, %v298
    %336 = vadd.xlane.f32.xlu0 %v335
    %v337 = vpop.xlane.xlu0 %336
    %v338 = vmul.f32 %v249, %v249
    %v339 = vmul.f32 %v251, %v251
    %v340 = vmul.f32 %v292, %v292
    %v341 = vmul.f32 %v294, %v294
    %v342 = vmul.f32 %v253, %v253
    %v343 = vmul.f32 %v255, %v255
    %v344 = vmul.f32 %v296, %v296
    %v345 = vmul.f32 %v298, %v298
    %v346 = vadd.f32 %v338, %v339
    %v347 = vadd.f32 %v346, %v340
    %v348 = vadd.f32 %v347, %v341
    %349 = vadd.xlane.f32.xlu0 %v348
    %v350 = vpop.xlane.xlu0 %349
    %v351 = vadd.f32 %v342, %v343
    %v352 = vadd.f32 %v351, %v344
    %v353 = vadd.f32 %v352, %v345
    %354 = vadd.xlane.f32.xlu0 %v353
    %v355 = vpop.xlane.xlu0 %354
    %vm356 = vcmask 7168
    %357 = vst.msk [vmem:[%s4] sm:$0xff] %vm356, %v304
    %358 = vst.msk [vmem:[%s4 + $0x8] sm:$0xff] %vm356, %v309
    %359 = vst.msk [vmem:[%s4 + $0x10] sm:$0xff] %vm356, %v322
    %360 = vst.msk [vmem:[%s4 + $0x18] sm:$0xff] %vm356, %v327
    %361 = vst.msk [vmem:[%s4 + $0x20] sm:$0xff] %vm356, %v332
    %362 = vst.msk [vmem:[%s4 + $0x28] sm:$0xff] %vm356, %v337
    %363 = vst.msk [vmem:[%s4 + $0x30] sm:$0xff] %vm356, %v350
    %364 = vst.msk [vmem:[%s4 + $0x38] sm:$0xff] %vm356, %v355
    // Predicated region
    $region30: #{tpu_custom_call.1} parent=1 // pred_check
      _
    $region31: #{tpu_custom_call.1} parent=1 // pred_check_branch
      %366 = sbr.rel (0) target = $region33
    $region32: #{tpu_custom_call.1} parent=1 // pred_region
      _
    $region33: #{tpu_custom_call.1} parent=1 // pred_fallthru
      _
    // Predicated region
    $region34: #{tpu_custom_call.1} parent=1 // pred_check
      _
    $region35: #{tpu_custom_call.1} parent=1 // pred_check_branch
      %368 = sbr.rel (0) target = $region37
    $region36: #{tpu_custom_call.1} parent=1 // pred_region
      _
    $region37: #{tpu_custom_call.1} parent=1 // pred_fallthru
      _
    %369 = vsyncpa [#allocation3], 1
    %370 = vsyncpa [#allocation5], 1

</llo_original>
